<compile_context>
chip_gen: v6e
topology: v6e:2x2x1
jax: 0.10.0
libtpu: 0.0.40
codegen_flags: <defaults>
</compile_context>

<pallas_src>
import functools
import re

import jax
import jax.numpy as jnp
from jax.experimental import pallas as pl
from jax.experimental.pallas import tpu as pltpu


_MiB = 1024 * 1024

# Graceful fallback if an older jax lacks the enum constants.
_PARALLEL = getattr(pltpu, "PARALLEL", "parallel")
_ARBITRARY = getattr(pltpu, "ARBITRARY", "arbitrary")
_CORE_PARALLEL = getattr(pltpu, "CORE_PARALLEL", _PARALLEL)


def _tpu_generation():
    """Best-effort TPU generation number (5, 6, 7, ...) from device_kind."""
    try:
        kind = jax.devices()[0].device_kind
    except Exception:
        return 6
    m = re.search(r"(\d+)", str(kind))
    return int(m.group(1)) if m else 6


def _generation_params():
    """Per-generation block-size / VMEM-limit / parallelism knobs.

    The kernel is pure HBM streaming, so the per-input block target scales with
    HBM bandwidth to amortize the ~0.35 us per-grid-step overhead, while
    2 inputs x 2 pipeline buffers x block (+ a tiny lane-narrow accumulator)
    stays inside each generation's VMEM budget.
    """
    gen = _tpu_generation()
    if gen >= 7:
        # v7x: ~3.2 TB/s HBM, 64 MiB physical VMEM, 2 TensorCores per chip.
        # 2 inputs x 2 buffers x 6 MiB = 24 MiB; 48 MiB limit leaves headroom.
        return dict(gen=gen, block_bytes=6 * _MiB, vmem_limit=48 * _MiB,
                    min_row_blocks=2)
    if gen == 6:
        # v6e: ~1.4 TB/s HBM, 128 MiB physical VMEM (32 MiB scoped default).
        return dict(gen=gen, block_bytes=6 * _MiB, vmem_limit=64 * _MiB,
                    min_row_blocks=1)
    # v5e and older: ~0.8 TB/s HBM, 16 MiB scoped-VMEM default.
    return dict(gen=gen, block_bytes=3 * _MiB, vmem_limit=32 * _MiB,
                min_row_blocks=1)


def _choose_tiles(rows, cols, itemsize, target_block_bytes, min_row_blocks):
    """Pick (tile_rows, tile_cols) for a ~target_block_bytes per-input block."""
    # Sublane packing multiple: 8 rows/vreg for f32, 16 for bf16, 32 for int8.
    sublane = max(8, 32 // max(1, itemsize))

    # Column tiling: keep the full time axis in one block when a minimal
    # row-slab fits the byte budget (block_shape[-1] == full array dim needs no
    # 128-multiple); otherwise chunk the time axis in 128-lane multiples and
    # mask the ragged edge in-kernel.
    if sublane * cols * itemsize <= target_block_bytes:
        tile_cols = cols
    else:
        tile_cols = max(128,
                        (target_block_bytes // (sublane * itemsize)) // 128 * 128)
        if tile_cols >= cols:
            tile_cols = cols

    # Row tiling: as many sublane-groups as fit the budget.
    max_rows = max(sublane,
                   (target_block_bytes // (tile_cols * itemsize))
                   // sublane * sublane)

    # v7x: cap tile_rows so the row ("parallel") axis yields >= min_row_blocks
    # blocks, letting both TensorCores pull HBM in parallel.
    if min_row_blocks > 1 and rows > sublane:
        cap = -(-rows // min_row_blocks)          # ceil(rows / min_row_blocks)
        cap = -(-cap // sublane) * sublane        # round up to sublane multiple
        max_rows = min(max_rows, cap)

    tile_rows = rows if rows <= max_rows else max_rows
    return tile_rows, tile_cols


def _l1_kernel(a_ref, b_ref, out_ref, *scratch, rows, cols, ni, nj,
               need_row_mask, need_col_mask):
    i = pl.program_id(0)          # row-block index  (parallel / core-parallel)
    j = pl.program_id(1)          # col-block index  (reduction, "arbitrary")

    a = a_ref[...].astype(jnp.float32)
    b = b_ref[...].astype(jnp.float32)
    diff = jnp.abs(a - b)
    tr, tc = a_ref.shape

    # Per-row partial sums of this block, shape (tile_rows, 1).  The cross-lane
    # reduce runs on the XLU (separate slot from the VPU) and the lane-narrow
    # result keeps the accumulator tiny (KBs) and off the vst critical path.
    def _plain(d, ii, jj):
        del ii, jj
        return jnp.sum(d, axis=-1, keepdims=True)

    if need_row_mask or need_col_mask:
        # Edge tiles overhang the array; overhang data is unspecified, so zero
        # it before accumulating.  Only edge blocks pay the iota+cmp+select.
        def _masked(d, ii, jj):
            if need_row_mask:
                rid = jax.lax.broadcasted_iota(jnp.int32, d.shape, 0)
                d = jnp.where(rid < rows - ii * tr, d, 0.0)
            if need_col_mask:
                cid = jax.lax.broadcasted_iota(jnp.int32, d.shape, 1)
                d = jnp.where(cid < cols - jj * tc, d, 0.0)
            return jnp.sum(d, axis=-1, keepdims=True)

        conds = []
        if need_row_mask:
            conds.append(i == ni - 1)
        if need_col_mask:
            conds.append(j == nj - 1)
        is_edge = conds[0] if len(conds) == 1 else jnp.logical_or(*conds)
        row_sums = jax.lax.cond(is_edge, _masked, _plain, diff, i, j)
    else:
        row_sums = _plain(diff, i, j)

    if scratch:
        # Multi-step column reduction: accumulate lane-narrow partials in a
        # tiny f32 VMEM buffer; finalize once per row block.
        acc_ref, = scratch

        @pl.when(j == 0)
        def _():
            acc_ref[...] = jnp.zeros_like(acc_ref)

        acc_ref[...] += row_sums

        @pl.when(j == nj - 1)
        def _():
            out_ref[0, 0] = jnp.sum(acc_ref[...])
    else:
        # Single column block: reduce directly, no accumulator needed.
        out_ref[0, 0] = jnp.sum(row_sums)


def hifi_l1_loss(output_melspec, melspec, *,
                 small_fallback_elems=16384,
                 target_block_bytes=None):
    """Pallas equivalent of HiFiLoss.forward(output_melspec=..., melspec=...)."""
    assert output_melspec.shape == melspec.shape
    total = output_melspec.size          # true element count (no padding anywhere)

    if total <= small_fallback_elems:
        # pallas_call fixed cost dwarfs ~KB-scale data movement.
        return jnp.mean(jnp.abs(output_melspec.astype(jnp.float32)
                                - melspec.astype(jnp.float32)))

    params = _generation_params()
    if target_block_bytes is None:
        target_block_bytes = params["block_bytes"]

    # Flatten (B, n_mels, T) -> (rows, cols); row-major reshape is free.
    cols = output_melspec.shape[-1]
    a2 = output_melspec.reshape(-1, cols)
    b2 = melspec.reshape(-1, cols)
    rows = a2.shape[0]

    itemsize = max(jnp.dtype(a2.dtype).itemsize, jnp.dtype(b2.dtype).itemsize)
    tile_rows, tile_cols = _choose_tiles(rows, cols, itemsize,
                                         target_block_bytes,
                                         params["min_row_blocks"])
    ni = pl.cdiv(rows, tile_rows)
    nj = pl.cdiv(cols, tile_cols)

    need_row_mask = (rows % tile_rows) != 0
    need_col_mask = (cols % tile_cols) != 0

    kernel = functools.partial(
        _l1_kernel, rows=rows, cols=cols, ni=ni, nj=nj,
        need_row_mask=need_row_mask, need_col_mask=need_col_mask)

    scratch = []
    if nj > 1:
        # Lane-narrow accumulator: one f32 partial per row of the block.
        scratch.append(pltpu.VMEM((tile_rows, 1), jnp.float32))

    # Row blocks are independent partial sums.  On v7x shard them across the
    # two TensorCores; on single-TC chips plain "parallel" is equivalent.
    row_sem = _CORE_PARALLEL if (params["gen"] >= 7 and ni >= 2) else _PARALLEL

    partials = pl.pallas_call(
        kernel,
        out_shape=jax.ShapeDtypeStruct((ni, 1), jnp.float32),
        grid_spec=pltpu.PrefetchScalarGridSpec(
            num_scalar_prefetch=0,
            grid=(ni, nj),
            in_specs=[
                pl.BlockSpec((tile_rows, tile_cols), lambda i, j: (i, j)),
                pl.BlockSpec((tile_rows, tile_cols), lambda i, j: (i, j)),
            ],
            out_specs=pl.BlockSpec((1, 1), lambda i, j: (i, 0),
                                   memory_space=pltpu.SMEM),
            scratch_shapes=scratch,
        ),
        compiler_params=pltpu.CompilerParams(
            dimension_semantics=(row_sem, _ARBITRARY),
            vmem_limit_bytes=params["vmem_limit"],
        ),
        cost_estimate=pl.CostEstimate(
            flops=3 * total,                        # sub + abs + add per element
            bytes_accessed=2 * total * itemsize,    # two streamed inputs
            transcendentals=0,
        ),
    )(a2, b2)

    # Tiny final reduce of <ni> partials + scaling by the true element count.
    return jnp.sum(partials) * jnp.float32(1.0 / total)


# TODO(synk): real_loss / disc_forward / feature_loss are auxiliary methods not
# used by HiFiLoss.forward; they are not implemented here.


if __name__ == "__main__":
    key = jax.random.PRNGKey(0)
    k1, k2, k3, k4, k5, k6 = jax.random.split(key, 6)

    # Case 1: shapes consistent with forward — melspec (batch, n_mels, time).
    B, M, T = 2, 8, 50
    output_melspec = jax.random.normal(k1, (B, M, T), dtype=jnp.float32)
    melspec = jax.random.normal(k2, (B, M, T), dtype=jnp.float32)
    loss = jax.block_until_ready(
        hifi_l1_loss(output_melspec, melspec, small_fallback_elems=0))
    ref = jnp.mean(jnp.abs(output_melspec - melspec))
    assert jnp.allclose(loss, ref, rtol=1e-5, atol=1e-6), (loss, ref)

    # Case 2: force tiny blocks to exercise the 2-D grid, the lane-narrow VMEM
    # accumulator, and the edge-only masking (rows=10 % 8 != 0, cols=300 % 128).
    a = jax.random.normal(k3, (2, 5, 300), dtype=jnp.float32)
    b = jax.random.normal(k4, (2, 5, 300), dtype=jnp.float32)
    loss2 = jax.block_until_ready(
        hifi_l1_loss(a, b, small_fallback_elems=0, target_block_bytes=4096))
    ref2 = jnp.mean(jnp.abs(a - b))
    assert jnp.allclose(loss2, ref2, rtol=1e-5, atol=1e-6), (loss2, ref2)

    # Case 3: bf16 inputs (streamed as bf16, upcast in-kernel; 16-row sublane).
    a16 = jax.random.normal(k5, (2, 80, 200), dtype=jnp.float32).astype(jnp.bfloat16)
    b16 = jax.random.normal(k6, (2, 80, 200), dtype=jnp.float32).astype(jnp.bfloat16)
    loss3 = jax.block_until_ready(
        hifi_l1_loss(a16, b16, small_fallback_elems=0, target_block_bytes=8192))
    ref3 = jnp.mean(jnp.abs(a16.astype(jnp.float32) - b16.astype(jnp.float32)))
    assert jnp.allclose(loss3, ref3, rtol=1e-4, atol=1e-5), (loss3, ref3)

    print("KERNEL_OK")
</pallas_src>

<mosaic_0001>
module attributes {stable_mosaic.version = 11 : i64} {
  func.func @_l1_kernel(%arg0: i32, %arg1: i32, %arg2: memref<16x50xf32, #tpu.memory_space<vmem>>, %arg3: memref<16x50xf32, #tpu.memory_space<vmem>>, %arg4: memref<1x1xf32, #tpu.memory_space<smem>>) attributes {dimension_semantics = [#tpu.dimension_semantics<parallel>, #tpu.dimension_semantics<arbitrary>], iteration_bounds = array<i64: 1, 1>, scalar_prefetch = 0 : i64, scratch_operands = 0 : i64, tpu.core_type = #tpu.core_type<tc>, window_params = [{transform_indices = @transform_0, window_bounds = array<i64: 16, 50>}, {transform_indices = @transform_1, window_bounds = array<i64: 16, 50>}, {transform_indices = @transform_2, window_bounds = array<i64: 1, 1>}]} {
    %c0 = arith.constant 0 : index
    %c0_0 = arith.constant 0 : index
    %0 = vector.load %arg2[%c0, %c0_0] : memref<16x50xf32, #tpu.memory_space<vmem>>, vector<16x50xf32>
    %c0_1 = arith.constant 0 : index
    %c0_2 = arith.constant 0 : index
    %1 = vector.load %arg3[%c0_1, %c0_2] : memref<16x50xf32, #tpu.memory_space<vmem>>, vector<16x50xf32>
    %2 = arith.subf %0, %1 : vector<16x50xf32>
    %3 = math.absf %2 : vector<16x50xf32>
    %cst = arith.constant dense<0.000000e+00> : vector<16xf32>
    %4 = vector.multi_reduction <add>, %3, %cst [1] : vector<16x50xf32> to vector<16xf32>
    %5 = vector.shape_cast %4 : vector<16xf32> to vector<16x1xf32>
    %6 = vector.shape_cast %5 : vector<16x1xf32> to vector<1x16x1xf32>
    %cst_3 = arith.constant dense<0.000000e+00> : vector<1xf32>
    %7 = vector.multi_reduction <add>, %6, %cst_3 [1, 2] : vector<1x16x1xf32> to vector<1xf32>
    %8 = vector.shape_cast %7 : vector<1xf32> to vector<1x1x1xf32>
    %9 = vector.extract %8[0, 0, 0] : f32 from vector<1x1x1xf32>
    %c0_4 = arith.constant 0 : index
    %c0_5 = arith.constant 0 : index
    %10 = memref.load %arg4[%c0_4, %c0_5] : memref<1x1xf32, #tpu.memory_space<smem>>
    memref.store %9, %arg4[%c0_4, %c0_5] : memref<1x1xf32, #tpu.memory_space<smem>>
    return
  }
  func.func @transform_0(%arg0: i32, %arg1: i32) -> (i32, i32) {
    %c0_i32 = arith.constant 0 : i32
    return %arg0, %arg1 : i32, i32
  }
  func.func @transform_1(%arg0: i32, %arg1: i32) -> (i32, i32) {
    %c0_i32 = arith.constant 0 : i32
    return %arg0, %arg1 : i32, i32
  }
  func.func @transform_2(%arg0: i32, %arg1: i32) -> (i32, i32) {
    %c0_i32 = arith.constant 0 : i32
    %c0_i32_0 = arith.constant 0 : i32
    return %arg0, %c0_i32 : i32, i32
  }
}

</mosaic_0001>

<llo_original>
// kernel: tpu_custom_call.1
$region0: #{tpu_custom_call.1}
  #allocation0 [shape = 'u32[]', space=smem, size = 0x4, offset = 0x4, fixed_abs, tag = 'smem constant byte address 0x4 - core index']
  #allocation1 [shape = 'u32[144,128]{1,0:T(1,128)}', space=vmem, size = 0x12000, scoped, tag = 'internal scratch']
  %s0 = inlined_call_operand.hbm [shape: f32[16,50], index: 0, kind: input, shape index: {}]
  %s1 = inlined_call_operand.hbm [shape: f32[16,50], index: 1, kind: input, shape index: {}]
  %s2 = inlined_call_operand.hbm [shape: f32[1,1], index: 2, kind: output, shape index: {}]
  %s3 = sld [smem:[#allocation0]]
  $region26: #{tpu_custom_call.1} parent=0
    _
  %s5 = ssub.s32 1, %s3
  %s6 = scalar_select 0, %s5, %s3
  $region1: #{tpu_custom_call.1} parent=0
    #allocation2 [shape = 'u8[8192]{0}', space=vmem, size = 0x2000, scoped, tag = 'input window, operand 0, single buffered']
    #allocation3 [shape = 's32[1]{0}', space=sflag, size = 0x4, scoped, tag = 'scoped memory for tpu_custom_call.1']
    #allocation4 [shape = 's32[1]{0}', space=sflag, size = 0x4, scoped, tag = 'scoped memory for tpu_custom_call.1']
    #allocation5 [shape = 'u8[8192]{0}', space=vmem, size = 0x2000, scoped, tag = 'input window, operand 1, single buffered']
    #allocation6 [shape = 's32[1]{0}', space=sflag, size = 0x4, scoped, tag = 'scoped memory for tpu_custom_call.1']
    #allocation7 [shape = 'u8[512]{0}', space=smem, size = 0x200, scoped, tag = 'output window, operand 0, single buffered']
    %7 = vsyncpa [#allocation3], 0
    %8 = vsyncpa [#allocation6], 0
    %9 = vsyncpa [#allocation4], 0
    // Predicated region
    $region2: #{tpu_custom_call.1} parent=1 // pred_check
      _
    $region3: #{tpu_custom_call.1} parent=1 // pred_check_branch
      %11 = sbr.rel (0) target = $region5
    $region4: #{tpu_custom_call.1} parent=1 // pred_region
      %s13 = ssub.s32 256, 256
      %14 = vsyncadd [#allocation3], %s13
      %s15 = sshll.u32 [#allocation2], 4
      %s16 = int_to_ptr.vmem [resolvable:$true] %s15
      %21 = dma.hbm_to_vmem [thread:$0]  %s0, 256, %s16, [#allocation3], 128, 128, 8
    $region5: #{tpu_custom_call.1} parent=1 // pred_fallthru
      _
    // Predicated region
    $region6: #{tpu_custom_call.1} parent=1 // pred_check
      _
    $region7: #{tpu_custom_call.1} parent=1 // pred_check_branch
      %23 = sbr.rel (0) target = $region9
    $region8: #{tpu_custom_call.1} parent=1 // pred_region
      %s25 = ssub.s32 256, 256
      %26 = vsyncadd [#allocation6], %s25
      %s27 = sshll.u32 [#allocation5], 4
      %s28 = int_to_ptr.vmem [resolvable:$true] %s27
      %33 = dma.hbm_to_vmem [thread:$0]  %s1, 256, %s28, [#allocation6], 128, 128, 8
    $region9: #{tpu_custom_call.1} parent=1 // pred_fallthru
      _
    // Predicated region
    $region10: #{tpu_custom_call.1} parent=1 // pred_check
      _
    $region11: #{tpu_custom_call.1} parent=1 // pred_check_branch
      %35 = sbr.rel (0) target = $region13
    $region12: #{tpu_custom_call.1} parent=1 // pred_region
      %36 = dma.done [#allocation3], 256
    $region13: #{tpu_custom_call.1} parent=1 // pred_fallthru
      _
    // Predicated region
    $region14: #{tpu_custom_call.1} parent=1 // pred_check
      _
    $region15: #{tpu_custom_call.1} parent=1 // pred_check_branch
      %38 = sbr.rel (0) target = $region17
    $region16: #{tpu_custom_call.1} parent=1 // pred_region
      %39 = dma.done [#allocation6], 256
    $region17: #{tpu_custom_call.1} parent=1 // pred_fallthru
      _
    %v40 = vld [vmem:[#allocation2] sm:$0xff]
    %v41 = vld [vmem:[#allocation2 + $0x8] sm:$0xff]
    %v42 = vld [vmem:[#allocation5] sm:$0xff]
    %v43 = vld [vmem:[#allocation5 + $0x8] sm:$0xff]
    %v44 = vsub.f32 %v40, %v42
    %v45 = vsub.f32 %v41, %v43
    %v46 = vand.u32 2147483647, %v44
    %v47 = vand.u32 2147483647, %v45
    %vm48 = vcmask 408576
    %v49 = vsel %vm48, %v46, 0.0
    %50 = vadd.xlane.f32.xlu0 %v49
    %v51 = vpop.xlane.xlu0 %50
    %v52 = vsel %vm48, %v47, 0.0
    %53 = vadd.xlane.f32.xlu0 %v52
    %v54 = vpop.xlane.xlu0 %53
    %vm55 = vcmask 7168
    %v56 = vsel %vm55, %v51, 0.0
    %v57 = vsel %vm55, %v54, 0.0
    %v58 = vadd.f32 %v56, %v57
    %59 = vadd.xlane.f32.xlu0 %v58
    %v60 = vpop.xlane.xlu0 %59
    %v61 = vrot.slane %v60, 4
    %v62 = vadd.f32 %v60, %v61
    %v63 = vrot.slane %v62, 2
    %v64 = vadd.f32 %v62, %v63
    %v65 = vrot.slane %v64, 1
    %v66 = vadd.f32 %v64, %v65
    %s67 = vtos %v66
    %s68 = scalar_lea.smem [#allocation7], 0
    %69 = sst [smem:[%s68]] %s67
    // Predicated region
    $region18: #{tpu_custom_call.1} parent=1 // pred_check
      _
    $region19: #{tpu_custom_call.1} parent=1 // pred_check_branch
      %71 = sbr.rel (0) target = $region21
    $region20: #{tpu_custom_call.1} parent=1 // pred_region
      %s73 = ssub.s32 16, 16
      %74 = vsyncadd [#allocation4], %s73
      %77 = dma.smem_to_hbm [#allocation7], 16, %s2, [#allocation4]
    $region21: #{tpu_custom_call.1} parent=1 // pred_fallthru
      _
    // Predicated region
    $region22: #{tpu_custom_call.1} parent=1 // pred_check
      _
    $region23: #{tpu_custom_call.1} parent=1 // pred_check_branch
      %79 = sbr.rel (0) target = $region25
    $region24: #{tpu_custom_call.1} parent=1 // pred_region
      %80 = dma.done [#allocation4], 16
    $region25: #{tpu_custom_call.1} parent=1 // pred_fallthru
      _
    %81 = sfence
    %82 = vsyncpa [#allocation3], 1
    %83 = vsyncpa [#allocation6], 1
    %84 = vsyncpa [#allocation4], 1

</llo_original>
